<compile_context>
chip_gen: v6e
topology: v6e:2x2x1
jax: 0.10.0
libtpu: 0.0.40
codegen_flags: <defaults>
</compile_context>

<pallas_src>
import jax
import jax.numpy as jnp
from jax.experimental import pallas as pl
from jax.experimental.pallas import tpu as pltpu

_H1, _H2 = 64, 32
_BN_EPS = 1e-5


def _mlp_kernel(x_ref, w1_ref, b1_ref, w2_ref, b2_ref, w3_ref, b3_ref, o_ref):
    x = x_ref[...]                                                  # (TB, D_in) bf16

    # layer1 (+ folded BN1) + ReLU
    h1 = jnp.dot(x, w1_ref[...], preferred_element_type=jnp.float32)
    h1 = jnp.maximum(h1 + b1_ref[...], 0.0)

    # layer2 (+ folded BN2) + ReLU
    h2 = jnp.dot(h1.astype(jnp.bfloat16), w2_ref[...],
                 preferred_element_type=jnp.float32)
    h2 = jnp.maximum(h2 + b2_ref[...], 0.0)

    # layer3 + softmax(dim=1) over a lane-dense (128-padded) f32 block.
    # Padded columns have zero weights and a -1e30 bias, so exp() is exactly 0
    # there and the softmax over the real columns is unchanged.
    logits = jnp.dot(h2.astype(jnp.bfloat16), w3_ref[...],
                     preferred_element_type=jnp.float32)
    logits = logits + b3_ref[...]
    m = jnp.max(logits, axis=-1, keepdims=True)
    e = jnp.exp(logits - m)
    denom = jnp.sum(e, axis=-1, keepdims=True)
    probs = e * pl.reciprocal(denom, approx=True)

    # Narrow store: only the real num_classes columns are written back to HBM.
    o_ref[...] = probs[:, : o_ref.shape[-1]].astype(o_ref.dtype)


def prepare_params(params):
    """One-time (hoisted) weight prep: fold eval-mode BN, pad w3, cast bf16."""
    def fold_bn(w, b, gamma, beta, mean, var):
        scale = gamma / jnp.sqrt(var + _BN_EPS)
        shift = beta - mean * scale
        return w * scale[None, :], b * scale + shift

    w1f, b1f = fold_bn(params["w1"], params["b1"], params["bn1_gamma"],
                       params["bn1_beta"], params["bn1_mean"], params["bn1_var"])
    w2f, b2f = fold_bn(params["w2"], params["b2"], params["bn2_gamma"],
                       params["bn2_beta"], params["bn2_mean"], params["bn2_var"])

    num_classes = params["w3"].shape[1]
    input_size = params["w1"].shape[0]
    # Lane-dense last-layer compute block: pad output columns to 128; padded
    # bias -1e30 -> those columns contribute exactly 0 to the f32 softmax.
    c_pad = max(128, pl.cdiv(num_classes, 128) * 128)
    w3f = jnp.zeros((params["w3"].shape[0], c_pad), jnp.float32)
    w3f = w3f.at[:, :num_classes].set(params["w3"])
    b3f = jnp.full((c_pad,), -1e30, jnp.float32)
    b3f = b3f.at[:num_classes].set(params["b3"])

    prepared = {
        "w1b": w1f.astype(jnp.bfloat16),
        "w2b": w2f.astype(jnp.bfloat16),
        "w3b": w3f.astype(jnp.bfloat16),
        "b1b": b1f.reshape(1, -1).astype(jnp.float32),
        "b2b": b2f.reshape(1, -1).astype(jnp.float32),
        "b3b": b3f.reshape(1, -1),
        "num_classes": num_classes,
        "c_pad": c_pad,
        "input_size": input_size,
    }
    return prepared


def _vmem_capacity_bytes():
    try:
        return int(pltpu.get_tpu_info().vmem_capacity_bytes)
    except Exception:
        return 64 << 20  # conservative (v7x per-TC) fallback


def _choose_batch_tile(batch, input_size, c_pad, num_classes, vmem_cap):
    # ~40% of physical VMEM: ~25 MiB on v7x (64 MiB/TC), ~51 MiB on v5e/v6e
    # (128 MiB).  Leaves room for weights, pipelining and compiler scratch.
    budget = int(vmem_cap * 0.4)
    # Per-row bytes: double-buffered bf16 x tile + double-buffered f32 out tile
    # + live f32 intermediates (h1, h2, logits, e) which may spill to VMEM.
    per_row = (2 * input_size * 2
               + 2 * num_classes * 4
               + (_H1 + _H2 + 2 * c_pad) * 4)
    tb = budget // per_row
    tb = int(max(16, min(4096, (tb // 16) * 16)))     # 16: bf16 sublane tile
    # Keep >= 2 grid steps so the 'parallel' batch axis can split across
    # v7x's two TensorCores (negligible cost on single-TC v5e/v6e).
    half = pl.cdiv(pl.cdiv(batch, 2), 16) * 16
    tb = min(tb, max(16, half))
    b_pad16 = pl.cdiv(batch, 16) * 16
    return min(tb, b_pad16)


def malware_model_forward(x, params, *, batch_tile=None):
    """x: (B, input_size) float32.

    params: either raw params (see init_params) or the output of
    prepare_params(); pass the prepared dict to avoid per-call weight prep.
    """
    if "w1b" not in params:
        params = prepare_params(params)

    B, D = x.shape
    assert D == params["input_size"]
    num_classes = params["num_classes"]
    c_pad = params["c_pad"]

    vmem_cap = _vmem_capacity_bytes()
    tb = (batch_tile if batch_tile is not None
          else _choose_batch_tile(B, D, c_pad, num_classes, vmem_cap))
    n_tiles = pl.cdiv(B, tb)
    b_padded = n_tiles * tb

    x_b = x.astype(jnp.bfloat16)
    if b_padded != B:
        x_b = jnp.pad(x_b, ((0, b_padded - B), (0, 0)))

    w1b, b1b = params["w1b"], params["b1b"]
    w2b, b2b = params["w2b"], params["b2b"]
    w3b, b3b = params["w3b"], params["b3b"]

    def resident(a):  # whole array, same block every grid step -> stays in VMEM
        return pl.BlockSpec(a.shape, lambda i, nd=a.ndim: (0,) * nd)

    # Triple-buffer only the big streamed operand (x) when it dominates bytes.
    x_bufs = 3 if D >= 1024 else 2
    if x_bufs == 3:
        x_spec = pl.BlockSpec((tb, D), lambda i: (i, 0),
                              pipeline_mode=pl.Buffered(3))
    else:
        x_spec = pl.BlockSpec((tb, D), lambda i: (i, 0))

    # Explicit VMEM limit sized from the actual tiles (default scoped limit is
    # only 16/32 MiB, well under physical VMEM).
    weight_bytes = 2 * (w1b.size * 2 + w2b.size * 2 + w3b.size * 2
                        + (b1b.size + b2b.size + b3b.size) * 4)
    est_bytes = (x_bufs * tb * D * 2
                 + 2 * tb * num_classes * 4
                 + tb * (_H1 + _H2 + 2 * c_pad) * 4
                 + weight_bytes)
    vmem_limit = int(min(vmem_cap * 0.85, max(32 << 20, 2 * est_bytes)))

    out = pl.pallas_call(
        _mlp_kernel,
        out_shape=jax.ShapeDtypeStruct((b_padded, num_classes), jnp.float32),
        grid=(n_tiles,),
        in_specs=[x_spec,
                  resident(w1b), resident(b1b),
                  resident(w2b), resident(b2b),
                  resident(w3b), resident(b3b)],
        out_specs=pl.BlockSpec((tb, num_classes), lambda i: (i, 0)),
        compiler_params=pltpu.CompilerParams(
            dimension_semantics=("parallel",),
            vmem_limit_bytes=vmem_limit),
    )(x_b, w1b, b1b, w2b, b2b, w3b, b3b)

    return out[:B] if b_padded != B else out


def init_params(key, input_size, num_classes=2):
    ks = jax.random.split(key, 8)
    h1, h2 = _H1, _H2
    p = {
        # Linear weights stored as (in, out) = PyTorch weight.T
        "w1": jax.random.normal(ks[0], (input_size, h1), jnp.float32) * 0.1,
        "b1": jax.random.normal(ks[1], (h1,), jnp.float32) * 0.05,
        "w2": jax.random.normal(ks[2], (h1, h2), jnp.float32) * 0.1,
        "b2": jax.random.normal(ks[3], (h2,), jnp.float32) * 0.05,
        "w3": jax.random.normal(ks[4], (h2, num_classes), jnp.float32) * 0.1,
        "b3": jax.random.normal(ks[5], (num_classes,), jnp.float32) * 0.05,
        # BatchNorm1d params + running stats (eval mode)
        "bn1_gamma": 1.0 + 0.1 * jax.random.normal(ks[6], (h1,), jnp.float32),
        "bn1_beta": jnp.zeros((h1,), jnp.float32),
        "bn1_mean": jnp.zeros((h1,), jnp.float32),
        "bn1_var": jnp.ones((h1,), jnp.float32),
        "bn2_gamma": 1.0 + 0.1 * jax.random.normal(ks[7], (h2,), jnp.float32),
        "bn2_beta": jnp.zeros((h2,), jnp.float32),
        "bn2_mean": jnp.zeros((h2,), jnp.float32),
        "bn2_var": jnp.ones((h2,), jnp.float32),
    }
    return p


def _reference_forward(x, params):
    """Pure-JAX f32 reference (eval-mode PyTorch semantics)."""
    eps = _BN_EPS
    h = x @ params["w1"] + params["b1"]
    h = (h - params["bn1_mean"]) / jnp.sqrt(params["bn1_var"] + eps) \
        * params["bn1_gamma"] + params["bn1_beta"]
    h = jnp.maximum(h, 0.0)
    h = h @ params["w2"] + params["b2"]
    h = (h - params["bn2_mean"]) / jnp.sqrt(params["bn2_var"] + eps) \
        * params["bn2_gamma"] + params["bn2_beta"]
    h = jnp.maximum(h, 0.0)
    logits = h @ params["w3"] + params["b3"]
    return jax.nn.softmax(logits, axis=1)


if __name__ == "__main__":
    key = jax.random.PRNGKey(0)
    k_x, k_p = jax.random.split(key)

    batch, input_size, num_classes = 8, 32, 2
    x = jax.random.normal(k_x, (batch, input_size), jnp.float32)
    params = init_params(k_p, input_size, num_classes)

    # Hoisted one-time weight prep (BN fold, padding, bf16 casts).
    prepared = prepare_params(params)

    out = malware_model_forward(x, prepared)
    out = jax.block_until_ready(out)
    ref = _reference_forward(x, params)

    assert out.shape == (batch, num_classes)
    # bf16 matmul inputs + approx reciprocal -> relaxed tolerance vs f32 ref.
    assert jnp.allclose(out, ref, atol=3e-2, rtol=3e-2), "mismatch vs reference"
    assert jnp.allclose(jnp.sum(out, axis=1), 1.0, atol=1e-2), "softmax rows"

    # Exercise the multi-tile batch path (padding + grid > 1) at a small size.
    batch2 = 70
    x2 = jax.random.normal(jax.random.PRNGKey(1), (batch2, input_size),
                           jnp.float32)
    out2 = jax.block_until_ready(
        malware_model_forward(x2, prepared, batch_tile=16))
    ref2 = _reference_forward(x2, params)
    assert out2.shape == (batch2, num_classes)
    assert jnp.allclose(out2, ref2, atol=3e-2, rtol=3e-2), "mismatch (tiled)"
    assert jnp.allclose(jnp.sum(out2, axis=1), 1.0, atol=1e-2), "softmax rows 2"

    print("KERNEL_OK")
</pallas_src>

<mosaic_0001>
module attributes {stable_mosaic.version = 11 : i64} {
  func.func @_mlp_kernel(%arg0: i32, %arg1: memref<16x32xbf16, #tpu.memory_space<vmem>>, %arg2: memref<32x64xbf16, #tpu.memory_space<vmem>>, %arg3: memref<1x64xf32, #tpu.memory_space<vmem>>, %arg4: memref<64x32xbf16, #tpu.memory_space<vmem>>, %arg5: memref<1x32xf32, #tpu.memory_space<vmem>>, %arg6: memref<32x128xbf16, #tpu.memory_space<vmem>>, %arg7: memref<1x128xf32, #tpu.memory_space<vmem>>, %arg8: memref<16x2xf32, #tpu.memory_space<vmem>>) attributes {dimension_semantics = [#tpu.dimension_semantics<parallel>], iteration_bounds = array<i64: 1>, scalar_prefetch = 0 : i64, scratch_operands = 0 : i64, tpu.core_type = #tpu.core_type<tc>, window_params = [{transform_indices = @transform_0, window_bounds = array<i64: 16, 32>}, {pipeline_mode = #tpu.pipeline_mode<synchronous>, transform_indices = @transform_1, window_bounds = array<i64: 32, 64>}, {pipeline_mode = #tpu.pipeline_mode<synchronous>, transform_indices = @transform_2, window_bounds = array<i64: 1, 64>}, {pipeline_mode = #tpu.pipeline_mode<synchronous>, transform_indices = @transform_3, window_bounds = array<i64: 64, 32>}, {pipeline_mode = #tpu.pipeline_mode<synchronous>, transform_indices = @transform_4, window_bounds = array<i64: 1, 32>}, {pipeline_mode = #tpu.pipeline_mode<synchronous>, transform_indices = @transform_5, window_bounds = array<i64: 32, 128>}, {pipeline_mode = #tpu.pipeline_mode<synchronous>, transform_indices = @transform_6, window_bounds = array<i64: 1, 128>}, {transform_indices = @transform_7, window_bounds = array<i64: 16, 2>}]} {
    %c0 = arith.constant 0 : index
    %c0_0 = arith.constant 0 : index
    %0 = vector.load %arg1[%c0, %c0_0] : memref<16x32xbf16, #tpu.memory_space<vmem>>, vector<16x32xbf16>
    %c0_1 = arith.constant 0 : index
    %c0_2 = arith.constant 0 : index
    %1 = vector.load %arg2[%c0_1, %c0_2] : memref<32x64xbf16, #tpu.memory_space<vmem>>, vector<32x64xbf16>
    %cst = arith.constant dense<0.000000e+00> : vector<16x64xf32>
    %2 = tpu.matmul %0, %1, %cst {dimension_numbers = #tpu.dot_dimension_numbers<[1], [0], [0], [1], [0, 0, 1, 1], [], []>} : vector<16x32xbf16>, vector<32x64xbf16>, vector<16x64xf32> -> vector<16x64xf32>
    %c0_3 = arith.constant 0 : index
    %c0_4 = arith.constant 0 : index
    %3 = vector.load %arg3[%c0_3, %c0_4] : memref<1x64xf32, #tpu.memory_space<vmem>>, vector<1x64xf32>
    %4 = vector.broadcast %3 : vector<1x64xf32> to vector<16x64xf32>
    %5 = arith.addf %2, %4 : vector<16x64xf32>
    %cst_5 = arith.constant 0.000000e+00 : f32
    %6 = vector.broadcast %cst_5 : f32 to vector<16x64xf32>
    %7 = arith.maximumf %5, %6 : vector<16x64xf32>
    %8 = arith.truncf %7 : vector<16x64xf32> to vector<16x64xbf16>
    %c0_6 = arith.constant 0 : index
    %c0_7 = arith.constant 0 : index
    %9 = vector.load %arg4[%c0_6, %c0_7] : memref<64x32xbf16, #tpu.memory_space<vmem>>, vector<64x32xbf16>
    %cst_8 = arith.constant dense<0.000000e+00> : vector<16x32xf32>
    %10 = tpu.matmul %8, %9, %cst_8 {dimension_numbers = #tpu.dot_dimension_numbers<[1], [0], [0], [1], [0, 0, 1, 1], [], []>} : vector<16x64xbf16>, vector<64x32xbf16>, vector<16x32xf32> -> vector<16x32xf32>
    %c0_9 = arith.constant 0 : index
    %c0_10 = arith.constant 0 : index
    %11 = vector.load %arg5[%c0_9, %c0_10] : memref<1x32xf32, #tpu.memory_space<vmem>>, vector<1x32xf32>
    %12 = vector.broadcast %11 : vector<1x32xf32> to vector<16x32xf32>
    %13 = arith.addf %10, %12 : vector<16x32xf32>
    %cst_11 = arith.constant 0.000000e+00 : f32
    %14 = vector.broadcast %cst_11 : f32 to vector<16x32xf32>
    %15 = arith.maximumf %13, %14 : vector<16x32xf32>
    %16 = arith.truncf %15 : vector<16x32xf32> to vector<16x32xbf16>
    %c0_12 = arith.constant 0 : index
    %c0_13 = arith.constant 0 : index
    %17 = vector.load %arg6[%c0_12, %c0_13] : memref<32x128xbf16, #tpu.memory_space<vmem>>, vector<32x128xbf16>
    %cst_14 = arith.constant dense<0.000000e+00> : vector<16x128xf32>
    %18 = tpu.matmul %16, %17, %cst_14 {dimension_numbers = #tpu.dot_dimension_numbers<[1], [0], [0], [1], [0, 0, 1, 1], [], []>} : vector<16x32xbf16>, vector<32x128xbf16>, vector<16x128xf32> -> vector<16x128xf32>
    %c0_15 = arith.constant 0 : index
    %c0_16 = arith.constant 0 : index
    %19 = vector.load %arg7[%c0_15, %c0_16] : memref<1x128xf32, #tpu.memory_space<vmem>>, vector<1x128xf32>
    %20 = vector.broadcast %19 : vector<1x128xf32> to vector<16x128xf32>
    %21 = arith.addf %18, %20 : vector<16x128xf32>
    %cst_17 = arith.constant dense<0xFF800000> : vector<16xf32>
    %22 = vector.multi_reduction <maximumf>, %21, %cst_17 [1] : vector<16x128xf32> to vector<16xf32>
    %23 = vector.shape_cast %22 : vector<16xf32> to vector<16x1xf32>
    %24 = vector.broadcast %23 : vector<16x1xf32> to vector<16x128xf32>
    %25 = arith.subf %21, %24 : vector<16x128xf32>
    %26 = math.exp %25 : vector<16x128xf32>
    %cst_18 = arith.constant dense<0.000000e+00> : vector<16xf32>
    %27 = vector.multi_reduction <add>, %26, %cst_18 [1] : vector<16x128xf32> to vector<16xf32>
    %28 = vector.shape_cast %27 : vector<16xf32> to vector<16x1xf32>
    %29 = tpu.reciprocal %28 {approx = true} : vector<16x1xf32> -> vector<16x1xf32>
    %30 = vector.broadcast %29 : vector<16x1xf32> to vector<16x128xf32>
    %31 = arith.mulf %26, %30 : vector<16x128xf32>
    %32 = vector.extract_strided_slice %31 {offsets = [0, 0], sizes = [16, 2], strides = [1, 1]} : vector<16x128xf32> to vector<16x2xf32>
    %c0_19 = arith.constant 0 : index
    %c0_20 = arith.constant 0 : index
    %33 = vector.load %arg8[%c0_19, %c0_20] : memref<16x2xf32, #tpu.memory_space<vmem>>, vector<16x2xf32>
    tpu.vector_store %arg8[%c0_19, %c0_20], %32 {strides = array<i32>} : memref<16x2xf32, #tpu.memory_space<vmem>>, vector<16x2xf32>,
    return
  }
  func.func @transform_0(%arg0: i32) -> (i32, i32) {
    %c0_i32 = arith.constant 0 : i32
    %c0_i32_0 = arith.constant 0 : i32
    return %arg0, %c0_i32 : i32, i32
  }
  func.func @transform_1(%arg0: i32) -> (i32, i32) {
    %c0_i32 = arith.constant 0 : i32
    %c0_i32_0 = arith.constant 0 : i32
    %c0_i32_1 = arith.constant 0 : i32
    return %c0_i32, %c0_i32_0 : i32, i32
  }
  func.func @transform_2(%arg0: i32) -> (i32, i32) {
    %c0_i32 = arith.constant 0 : i32
    %c0_i32_0 = arith.constant 0 : i32
    %c0_i32_1 = arith.constant 0 : i32
    return %c0_i32, %c0_i32_0 : i32, i32
  }
  func.func @transform_3(%arg0: i32) -> (i32, i32) {
    %c0_i32 = arith.constant 0 : i32
    %c0_i32_0 = arith.constant 0 : i32
    %c0_i32_1 = arith.constant 0 : i32
    return %c0_i32, %c0_i32_0 : i32, i32
  }
  func.func @transform_4(%arg0: i32) -> (i32, i32) {
    %c0_i32 = arith.constant 0 : i32
    %c0_i32_0 = arith.constant 0 : i32
    %c0_i32_1 = arith.constant 0 : i32
    return %c0_i32, %c0_i32_0 : i32, i32
  }
  func.func @transform_5(%arg0: i32) -> (i32, i32) {
    %c0_i32 = arith.constant 0 : i32
    %c0_i32_0 = arith.constant 0 : i32
    %c0_i32_1 = arith.constant 0 : i32
    return %c0_i32, %c0_i32_0 : i32, i32
  }
  func.func @transform_6(%arg0: i32) -> (i32, i32) {
    %c0_i32 = arith.constant 0 : i32
    %c0_i32_0 = arith.constant 0 : i32
    %c0_i32_1 = arith.constant 0 : i32
    return %c0_i32, %c0_i32_0 : i32, i32
  }
  func.func @transform_7(%arg0: i32) -> (i32, i32) {
    %c0_i32 = arith.constant 0 : i32
    %c0_i32_0 = arith.constant 0 : i32
    return %arg0, %c0_i32 : i32, i32
  }
}

</mosaic_0001>

<llo_original>
// kernel: tpu_custom_call.1
$region0: #{tpu_custom_call.1}
  #allocation0 [shape = 'u32[]', space=smem, size = 0x4, offset = 0x4, fixed_abs, tag = 'smem constant byte address 0x4 - core index']
  #allocation1 [shape = 'u32[144,128]{1,0:T(1,128)}', space=vmem, size = 0x12000, scoped, tag = 'internal scratch']
  %s0 = inlined_call_operand.vmem [shape: bf16[16,32], index: 0, kind: input, shape index: {}]
  %s1 = inlined_call_operand.vmem [shape: bf16[32,64], index: 1, kind: input, shape index: {}]
  %s2 = inlined_call_operand.vmem [shape: f32[1,64], index: 2, kind: input, shape index: {}]
  %s3 = inlined_call_operand.vmem [shape: bf16[64,32], index: 3, kind: input, shape index: {}]
  %s4 = inlined_call_operand.vmem [shape: f32[1,32], index: 4, kind: input, shape index: {}]
  %s5 = inlined_call_operand.vmem [shape: bf16[32,128], index: 5, kind: input, shape index: {}]
  %s6 = inlined_call_operand.vmem [shape: f32[1,128], index: 6, kind: input, shape index: {}]
  %s7 = inlined_call_operand.vmem [shape: f32[16,2], index: 7, kind: output, shape index: {}]
  %s8 = sld [smem:[#allocation0]]
  $region38: #{tpu_custom_call.1} parent=0
    _
  %s10 = ssub.s32 1, %s8
  %s11 = scalar_select 0, %s10, %s8
  // Predicated region
  $region2: #{tpu_custom_call.1} parent=0 // pred_check
    _
  $region3: #{tpu_custom_call.1} parent=0 // pred_check_branch
    %13 = sbr.rel (0) target = $region5
  $region4: #{tpu_custom_call.1} parent=0 // pred_region
    _
  $region5: #{tpu_custom_call.1} parent=0 // pred_fallthru
    _
  // Predicated region
  $region6: #{tpu_custom_call.1} parent=0 // pred_check
    _
  $region7: #{tpu_custom_call.1} parent=0 // pred_check_branch
    %15 = sbr.rel (0) target = $region9
  $region8: #{tpu_custom_call.1} parent=0 // pred_region
    _
  $region9: #{tpu_custom_call.1} parent=0 // pred_fallthru
    _
  // Predicated region
  $region10: #{tpu_custom_call.1} parent=0 // pred_check
    _
  $region11: #{tpu_custom_call.1} parent=0 // pred_check_branch
    %17 = sbr.rel (0) target = $region13
  $region12: #{tpu_custom_call.1} parent=0 // pred_region
    _
  $region13: #{tpu_custom_call.1} parent=0 // pred_fallthru
    _
  // Predicated region
  $region14: #{tpu_custom_call.1} parent=0 // pred_check
    _
  $region15: #{tpu_custom_call.1} parent=0 // pred_check_branch
    %19 = sbr.rel (0) target = $region17
  $region16: #{tpu_custom_call.1} parent=0 // pred_region
    _
  $region17: #{tpu_custom_call.1} parent=0 // pred_fallthru
    _
  // Predicated region
  $region18: #{tpu_custom_call.1} parent=0 // pred_check
    _
  $region19: #{tpu_custom_call.1} parent=0 // pred_check_branch
    %21 = sbr.rel (0) target = $region21
  $region20: #{tpu_custom_call.1} parent=0 // pred_region
    _
  $region21: #{tpu_custom_call.1} parent=0 // pred_fallthru
    _
  // Predicated region
  $region22: #{tpu_custom_call.1} parent=0 // pred_check
    _
  $region23: #{tpu_custom_call.1} parent=0 // pred_check_branch
    %23 = sbr.rel (0) target = $region25
  $region24: #{tpu_custom_call.1} parent=0 // pred_region
    _
  $region25: #{tpu_custom_call.1} parent=0 // pred_fallthru
    _
  // Predicated region
  $region26: #{tpu_custom_call.1} parent=0 // pred_check
    _
  $region27: #{tpu_custom_call.1} parent=0 // pred_check_branch
    %25 = sbr.rel (0) target = $region29
  $region28: #{tpu_custom_call.1} parent=0 // pred_region
    _
  $region29: #{tpu_custom_call.1} parent=0 // pred_fallthru
    _
  %v27 = vld [vmem:[%s0] sm:$0xf]
  %v28 = vld [vmem:[%s0 + $0x4] sm:$0xf]
  %v29 = vld [vmem:[%s1] sm:$0xf]
  %v30 = vld [vmem:[%s1 + $0x4] sm:$0xf]
  %v31 = vld [vmem:[%s1 + $0x8] sm:$0xf]
  %v32 = vld [vmem:[%s1 + $0xc] sm:$0xf]
  %v33 = vld [vmem:[%s2] sm:$0x1]
  %v35 = vlaneseq
  %v36 = vshrl.u32 %v35, 7
  %v37 = vsub.s32 0, %v36
  %v38 = vrot.slane %v33, %v37
  %v42 = vunpack.c.l.b16 %v27
  %v43 = vunpack.c.l.b16 %v28
  %v44 = vpack.c.b16 %v43, %v42
  %v49 = vunpack.c.l.b16 %v29
  %v50 = vunpack.c.l.b16 %v30
  %v51 = vunpack.c.l.b16 %v31
  %v52 = vunpack.c.l.b16 %v32
  %v53 = vpack.c.b16 %v50, %v49
  %v54 = vpack.c.b16 %v52, %v51
  %vm57 = vcmask 261120
  %v59 = vsel %vm57, %v44, 0
  %61 = vmatprep.subr.bf16.mxu0 0
  %62 = vmatpush1.bf16.msra.mxu0 0
  %63 = vmatprep.subr.bf16.mxu0 0
  %64 = vmatpush1.bf16.msra.mxu0 0
  %65 = vmatprep.subr.bf16.mxu0 0
  %66 = vmatpush1.bf16.msra.mxu0 0
  %67 = vmatprep.subr.bf16.mxu0 0
  %68 = vmatpush1.bf16.msra.mxu0 0
  %69 = vmatprep.subr.bf16.mxu0 0
  %70 = vmatpush1.bf16.msra.mxu0 0
  %71 = vmatprep.subr.bf16.mxu0 0
  %72 = vmatpush1.bf16.msra.mxu0 0
  %73 = vmatprep.subr.bf16.mxu0 0
  %74 = vmatpush1.bf16.msra.mxu0 %v54
  %75 = vmatprep.subr.bf16.mxu0 0
  %76 = vmatpush1.bf16.msra.mxu0 %v53
  %77 = vmatprep.subr.bf16.mxu0 0
  %78 = vmatpush2.bf16.msra.mxu0 0
  %79 = vmatprep.subr.bf16.mxu0 0
  %80 = vmatpush2.bf16.msra.mxu0 0
  %81 = vmatprep.subr.bf16.mxu0 0
  %82 = vmatpush2.bf16.msra.mxu0 0
  %83 = vmatprep.subr.bf16.mxu0 0
  %84 = vmatpush2.bf16.msra.mxu0 0
  %85 = vmatprep.subr.bf16.mxu0 0
  %86 = vmatpush2.bf16.msra.mxu0 0
  %87 = vmatprep.subr.bf16.mxu0 0
  %88 = vmatpush2.bf16.msra.mxu0 0
  %89 = vmatprep.subr.bf16.mxu0 0
  %90 = vmatpush2.bf16.msra.mxu0 0
  %91 = vmatprep.subr.bf16.mxu0 0
  %92 = vmatpush2.bf16.msra.mxu0 0
  %93 = vmatprep.mubr.bf16.mxu0 0
  %94 = vmatmul.mubr.bf16.gmra.mxu0 %v59
  %v95 = vpop.f32.mrf.mxu0
  %v96 = vadd.f32 %v38, %v95
  %v97 = vpop.f32.mrf.mxu0
  %v98 = vpop.f32.mrf.mxu0
  %v99 = vadd.f32 %v38, %v98
  %v100 = vpop.f32.mrf.mxu0
  %101 = vdwg.mxu0
  %v102 = vmax.f32 %v96, 0.0
  %v103 = vmax.f32 %v99, 0.0
  %v104 = vpack.c.bf16 %v103, %v102
  %v105 = vld [vmem:[%s3] sm:$0xf]
  %v106 = vld [vmem:[%s3 + $0x4] sm:$0xf]
  %v107 = vld [vmem:[%s3 + $0x8] sm:$0xf]
  %v108 = vld [vmem:[%s3 + $0xc] sm:$0xf]
  %v109 = vld [vmem:[%s3 + $0x10] sm:$0xf]
  %v110 = vld [vmem:[%s3 + $0x14] sm:$0xf]
  %v111 = vld [vmem:[%s3 + $0x18] sm:$0xf]
  %v112 = vld [vmem:[%s3 + $0x1c] sm:$0xf]
  %v113 = vld [vmem:[%s4] sm:$0x1]
  %v115 = vlaneseq
  %v116 = vshrl.u32 %v115, 7
  %v117 = vsub.s32 0, %v116
  %v118 = vrot.slane %v113, %v117
  %v128 = vunpack.c.l.b16 %v105
  %v129 = vunpack.c.l.b16 %v106
  %v130 = vunpack.c.l.b16 %v107
  %v131 = vunpack.c.l.b16 %v108
  %v132 = vunpack.c.l.b16 %v109
  %v133 = vunpack.c.l.b16 %v110
  %v134 = vunpack.c.l.b16 %v111
  %v135 = vunpack.c.l.b16 %v112
  %v136 = vpack.c.b16 %v129, %v128
  %v137 = vpack.c.b16 %v131, %v130
  %v138 = vpack.c.b16 %v133, %v132
  %v139 = vpack.c.b16 %v135, %v134
  %vm144 = vcmask 523264
  %v146 = vsel %vm144, %v104, 0
  %148 = vmatprep.subr.bf16.mxu0 0
  %149 = vmatpush1.bf16.msra.mxu0 0
  %150 = vmatprep.subr.bf16.mxu0 0
  %151 = vmatpush1.bf16.msra.mxu0 0
  %152 = vmatprep.subr.bf16.mxu0 0
  %153 = vmatpush1.bf16.msra.mxu0 0
  %154 = vmatprep.subr.bf16.mxu0 0
  %155 = vmatpush1.bf16.msra.mxu0 0
  %156 = vmatprep.subr.bf16.mxu0 0
  %157 = vmatpush1.bf16.msra.mxu0 %v139
  %158 = vmatprep.subr.bf16.mxu0 0
  %159 = vmatpush1.bf16.msra.mxu0 %v138
  %160 = vmatprep.subr.bf16.mxu0 0
  %161 = vmatpush1.bf16.msra.mxu0 %v137
  %162 = vmatprep.subr.bf16.mxu0 0
  %163 = vmatpush1.bf16.msra.mxu0 %v136
  %164 = vmatprep.subr.bf16.mxu0 0
  %165 = vmatpush2.bf16.msra.mxu0 0
  %166 = vmatprep.subr.bf16.mxu0 0
  %167 = vmatpush2.bf16.msra.mxu0 0
  %168 = vmatprep.subr.bf16.mxu0 0
  %169 = vmatpush2.bf16.msra.mxu0 0
  %170 = vmatprep.subr.bf16.mxu0 0
  %171 = vmatpush2.bf16.msra.mxu0 0
  %172 = vmatprep.subr.bf16.mxu0 0
  %173 = vmatpush2.bf16.msra.mxu0 0
  %174 = vmatprep.subr.bf16.mxu0 0
  %175 = vmatpush2.bf16.msra.mxu0 0
  %176 = vmatprep.subr.bf16.mxu0 0
  %177 = vmatpush2.bf16.msra.mxu0 0
  %178 = vmatprep.subr.bf16.mxu0 0
  %179 = vmatpush2.bf16.msra.mxu0 0
  %180 = vmatprep.mubr.bf16.mxu0 0
  %181 = vmatmul.mubr.bf16.gmra.mxu0 %v146
  %v182 = vpop.f32.mrf.mxu0
  %v183 = vadd.f32 %v118, %v182
  %v184 = vpop.f32.mrf.mxu0
  %v185 = vpop.f32.mrf.mxu0
  %v186 = vadd.f32 %v118, %v185
  %v187 = vpop.f32.mrf.mxu0
  %188 = vdwg.mxu0
  %v189 = vmax.f32 %v183, 0.0
  %v190 = vmax.f32 %v186, 0.0
  %v191 = vpack.c.bf16 %v190, %v189
  %v192 = vld [vmem:[%s5] sm:$0xf]
  %v193 = vld [vmem:[%s5 + $0x4] sm:$0xf]
  %v194 = vld [vmem:[%s5 + $0x8] sm:$0xf]
  %v195 = vld [vmem:[%s5 + $0xc] sm:$0xf]
  %v196 = vld [vmem:[%s6] sm:$0x1]
  %v198 = vlaneseq
  %v199 = vshrl.u32 %v198, 7
  %v200 = vsub.s32 0, %v199
  %v201 = vrot.slane %v196, %v200
  %v207 = vunpack.c.l.b16 %v192
  %v208 = vunpack.c.l.b16 %v193
  %v209 = vunpack.c.l.b16 %v194
  %v210 = vunpack.c.l.b16 %v195
  %v211 = vpack.c.b16 %v208, %v207
  %v212 = vpack.c.b16 %v210, %v209
  %v216 = vsel %vm57, %v191, 0
  %218 = vmatprep.subr.bf16.mxu0 0
  %219 = vmatpush1.bf16.msra.mxu0 0
  %220 = vmatprep.subr.bf16.mxu0 0
  %221 = vmatpush1.bf16.msra.mxu0 0
  %222 = vmatprep.subr.bf16.mxu0 0
  %223 = vmatpush1.bf16.msra.mxu0 0
  %224 = vmatprep.subr.bf16.mxu0 0
  %225 = vmatpush1.bf16.msra.mxu0 0
  %226 = vmatprep.subr.bf16.mxu0 0
  %227 = vmatpush1.bf16.msra.mxu0 0
  %228 = vmatprep.subr.bf16.mxu0 0
  %229 = vmatpush1.bf16.msra.mxu0 0
  %230 = vmatprep.subr.bf16.mxu0 0
  %231 = vmatpush1.bf16.msra.mxu0 %v212
  %232 = vmatprep.subr.bf16.mxu0 0
  %233 = vmatpush1.bf16.msra.mxu0 %v211
  %234 = vmatprep.subr.bf16.mxu0 0
  %235 = vmatpush2.bf16.msra.mxu0 0
  %236 = vmatprep.subr.bf16.mxu0 0
  %237 = vmatpush2.bf16.msra.mxu0 0
  %238 = vmatprep.subr.bf16.mxu0 0
  %239 = vmatpush2.bf16.msra.mxu0 0
  %240 = vmatprep.subr.bf16.mxu0 0
  %241 = vmatpush2.bf16.msra.mxu0 0
  %242 = vmatprep.subr.bf16.mxu0 0
  %243 = vmatpush2.bf16.msra.mxu0 0
  %244 = vmatprep.subr.bf16.mxu0 0
  %245 = vmatpush2.bf16.msra.mxu0 0
  %246 = vmatprep.subr.bf16.mxu0 0
  %247 = vmatpush2.bf16.msra.mxu0 0
  %248 = vmatprep.subr.bf16.mxu0 0
  %249 = vmatpush2.bf16.msra.mxu0 0
  %250 = vmatprep.mubr.bf16.mxu0 0
  %251 = vmatmul.mubr.bf16.gmra.mxu0 %v216
  %v252 = vpop.f32.mrf.mxu0
  %v253 = vadd.f32 %v201, %v252
  %v254 = vpop.f32.mrf.mxu0
  %v255 = vpop.f32.mrf.mxu0
  %v256 = vadd.f32 %v201, %v255
  %v257 = vpop.f32.mrf.mxu0
  %258 = vdwg.mxu0
  %259 = vmax.xlane.f32.xlu0 %v253
  %v260 = vpop.xlane.xlu0 %259
  %261 = vmax.xlane.f32.xlu0 %v256
  %v262 = vpop.xlane.xlu0 %261
  %v263 = vsub.f32 %v253, %v260
  %v264 = vsub.f32 %v256, %v262
  %v265 = vmul.f32 %v263, 1.442695
  %v266 = vpow.pop %v265
  %v267 = vmul.f32 %v264, 1.442695
  %v268 = vpow.pop %v267
  %269 = vadd.xlane.f32.xlu0 %v266
  %v270 = vpop.xlane.xlu0 %269
  %271 = vadd.xlane.f32.xlu0 %v268
  %v272 = vpop.xlane.xlu0 %271
  %v273 = vrcp.pop %v270
  %v274 = vrcp.pop %v272
  %v275 = vmul.f32 %v266, %v273
  %v276 = vmul.f32 %v268, %v274
  %vm277 = vcmask 15360
  %278 = vst.msk [vmem:[%s7] sm:$0xff] %vm277, %v275
  %279 = vst.msk [vmem:[%s7 + $0x8] sm:$0xff] %vm277, %v276
  // Predicated region
  $region30: #{tpu_custom_call.1} parent=0 // pred_check
    _
  $region31: #{tpu_custom_call.1} parent=0 // pred_check_branch
    %281 = sbr.rel (0) target = $region33
  $region32: #{tpu_custom_call.1} parent=0 // pred_region
    _
  $region33: #{tpu_custom_call.1} parent=0 // pred_fallthru
    _
  // Predicated region
  $region34: #{tpu_custom_call.1} parent=0 // pred_check
    _
  $region35: #{tpu_custom_call.1} parent=0 // pred_check_branch
    %283 = sbr.rel (0) target = $region37
  $region36: #{tpu_custom_call.1} parent=0 // pred_region
    _
  $region37: #{tpu_custom_call.1} parent=0 // pred_fallthru
    _

</llo_original>
